<compile_context>
chip_gen: v6e
topology: v6e:2x2x1
jax: 0.10.0
libtpu: 0.0.40
codegen_flags: <defaults>
</compile_context>

<pallas_src>
import math

import jax
import jax.numpy as jnp
from jax.experimental import pallas as pl
from jax.experimental.pallas import tpu as pltpu


def _round_up(x, m):
    return ((x + m - 1) // m) * m


# ---------------------------------------------------------------------------
# Kernel
# ---------------------------------------------------------------------------
def siamese_kernel(x_ref,
                   w1_ref, b1_ref,
                   w2_ref, b2_ref,
                   w3_ref, b3_ref,
                   out_ref):
    """Fused forward for both branches + cosine similarity.

    x_ref  : [2, T, Din]      bf16  (branch 0 / branch 1 stacked)
    wK_ref : [in, out_pad]    bf16  (BN already folded, pre-transposed)
    bK_ref : [1, out_pad]     f32
    out_ref: [T, 1]           f32
    """
    two, tile_b, d_in = x_ref.shape
    # Collapse the branch dim into the sublane (batch) dim -> ONE matmul
    # chain.  tile_b % 8 == 0, so this is a tile-aligned, copy-free reshape.
    x = x_ref[...].reshape(two * tile_b, d_in)                 # [2T, Din] bf16

    # Linear(+folded BN) -> ReLU   (Dropout == identity in eval mode).
    # bf16 operands feed the MXU natively; accumulate in f32.
    h = jnp.dot(x, w1_ref[...], preferred_element_type=jnp.float32) + b1_ref[...]
    h = jnp.maximum(h, 0.0)
    h = jnp.dot(h.astype(jnp.bfloat16), w2_ref[...],
                preferred_element_type=jnp.float32) + b2_ref[...]
    h = jnp.maximum(h, 0.0)
    h = jnp.dot(h.astype(jnp.bfloat16), w3_ref[...],
                preferred_element_type=jnp.float32) + b3_ref[...]           # [2T, O] f32

    # cosine of the L2-normalized embeddings, without materializing z:
    #   cos = (h1 . h2) * rsqrt(max(|h1|^2, 1e-24)) * rsqrt(max(|h2|^2, 1e-24))
    # (identical to F.normalize(p=2, eps=1e-12) followed by a row-wise dot;
    #  the 1e-8 clamps of F.cosine_similarity are no-ops on unit vectors.)
    ss = jnp.sum(h * h, axis=-1, keepdims=True)                # [2T, 1]
    h1, h2 = h[:tile_b], h[tile_b:]
    ss1, ss2 = ss[:tile_b], ss[tile_b:]
    cross = jnp.sum(h1 * h2, axis=-1, keepdims=True)           # [T, 1]
    cos = (cross
           * jax.lax.rsqrt(jnp.maximum(ss1, 1e-24))
           * jax.lax.rsqrt(jnp.maximum(ss2, 1e-24)))

    sim = (cos + 1.0) * 0.5
    eps = 1e-7
    out_ref[...] = jnp.clip(sim, eps, 1.0 - eps)


# ---------------------------------------------------------------------------
# Parameters (match PyTorch _initialize_weights) + one-time prep
# ---------------------------------------------------------------------------
def init_params(key, input_dim, hidden_dim, head_output_dim):
    """xavier_uniform_ Linear weights (stored as [in, out]), zero biases,
    BatchNorm gamma=1 / beta=0 with running_mean=0 / running_var=1."""

    def xavier(k, fan_in, fan_out):
        limit = math.sqrt(6.0 / (fan_in + fan_out))
        return jax.random.uniform(k, (fan_in, fan_out), jnp.float32,
                                  minval=-limit, maxval=limit)

    h2 = hidden_dim // 2
    k1, k2, k3 = jax.random.split(key, 3)
    return {
        "w1": xavier(k1, input_dim, hidden_dim),
        "b1": jnp.zeros((1, hidden_dim), jnp.float32),
        "w2": xavier(k2, hidden_dim, h2),
        "b2": jnp.zeros((1, h2), jnp.float32),
        "w3": xavier(k3, h2, head_output_dim),
        "b3": jnp.zeros((1, head_output_dim), jnp.float32),
        "bn1_gamma": jnp.ones((1, hidden_dim), jnp.float32),
        "bn1_beta": jnp.zeros((1, hidden_dim), jnp.float32),
        "bn1_mean": jnp.zeros((1, hidden_dim), jnp.float32),
        "bn1_var": jnp.ones((1, hidden_dim), jnp.float32),
        "bn2_gamma": jnp.ones((1, h2), jnp.float32),
        "bn2_beta": jnp.zeros((1, h2), jnp.float32),
        "bn2_mean": jnp.zeros((1, h2), jnp.float32),
        "bn2_var": jnp.ones((1, h2), jnp.float32),
    }


def prepare_params(params, input_dim, hidden_dim, head_output_dim):
    """One-time prep: fold eval-mode BN into the Linear weights/biases (in
    f32), pad only the weight OUTPUT dims up to 128 lanes, cast weights to
    bf16 for the MXU.  The input feature dim stays unpadded."""
    bn_eps = 1e-5
    h2 = hidden_dim // 2

    s1 = params["bn1_gamma"] / jnp.sqrt(params["bn1_var"] + bn_eps)
    t1 = params["bn1_beta"] - params["bn1_mean"] * s1
    s2 = params["bn2_gamma"] / jnp.sqrt(params["bn2_var"] + bn_eps)
    t2 = params["bn2_beta"] - params["bn2_mean"] * s2

    w1 = params["w1"] * s1            # scale output columns: x@(W*s) + (b*s+t)
    b1 = params["b1"] * s1 + t1
    w2 = params["w2"] * s2
    b2 = params["b2"] * s2 + t2
    w3 = params["w3"]
    b3 = params["b3"]

    h_pad = _round_up(hidden_dim, 128)
    h2_pad = _round_up(h2, 128)
    o_pad = _round_up(head_output_dim, 128)

    def pad2(a, rows, cols):
        return jnp.pad(a, ((0, rows - a.shape[0]), (0, cols - a.shape[1])))

    # Zero padding provably does not change the result: padded columns stay
    # exactly 0 through bias / ReLU and contribute 0 to ss / cross.
    return {
        "w1": pad2(w1, input_dim, h_pad).astype(jnp.bfloat16),   # [Din, Hp]
        "b1": pad2(b1, 1, h_pad),                                # f32
        "w2": pad2(w2, h_pad, h2_pad).astype(jnp.bfloat16),
        "b2": pad2(b2, 1, h2_pad),
        "w3": pad2(w3, h2_pad, o_pad).astype(jnp.bfloat16),
        "b3": pad2(b3, 1, o_pad),
        "input_dim": input_dim,       # python int (kept out of jit tracing)
    }


# ---------------------------------------------------------------------------
# Wrapper
# ---------------------------------------------------------------------------
def siamese_forward(x1, x2, prepped):
    """Returns similarity of shape [B, 1]."""
    B, d_in = x1.shape
    assert d_in == prepped["input_dim"]

    # Batch tiling: per-grid-step overhead (~0.35 us) dominates small tiles,
    # so use one tile for batches up to 1024 rows; bigger batches get
    # 1024-row tiles, which also yields >= 2 grid points so the "parallel"
    # axis shards across v7x's two TensorCores.  Everything fits comfortably
    # in VMEM on v5e/v6e/v7x at this size (weights resident, inputs < 100 KiB
    # per tile).
    b8 = _round_up(B, 8)
    tile_b = b8 if b8 <= 1024 else 1024
    b_pad = _round_up(b8, tile_b)
    num_tiles = b_pad // tile_b

    # Stack the two branches so one (2, tile_b, Din) block covers both; the
    # kernel collapses the leading dim instead of doing an in-kernel concat.
    x1p = jnp.pad(x1, ((0, b_pad - B), (0, 0)))
    x2p = jnp.pad(x2, ((0, b_pad - B), (0, 0)))
    xs = jnp.stack([x1p, x2p], axis=0).astype(jnp.bfloat16)     # [2, b_pad, Din]

    w1, b1 = prepped["w1"], prepped["b1"]
    w2, b2 = prepped["w2"], prepped["b2"]
    w3, b3 = prepped["w3"], prepped["b3"]

    x_spec = pl.BlockSpec((2, tile_b, d_in), lambda i: (0, i, 0))

    def const_spec(a):   # weights/biases: constant index_map -> stay resident
        return pl.BlockSpec(a.shape, lambda i: (0, 0))

    out = pl.pallas_call(
        siamese_kernel,
        out_shape=jax.ShapeDtypeStruct((b_pad, 1), jnp.float32),
        grid=(num_tiles,),
        in_specs=[x_spec,
                  const_spec(w1), const_spec(b1),
                  const_spec(w2), const_spec(b2),
                  const_spec(w3), const_spec(b3)],
        out_specs=pl.BlockSpec((tile_b, 1), lambda i: (i, 0)),
        compiler_params=pltpu.CompilerParams(
            dimension_semantics=("parallel",),
            vmem_limit_bytes=32 * 1024 * 1024),
    )(xs, w1, b1, w2, b2, w3, b3)

    return out[:B]


# ---------------------------------------------------------------------------
# Pure-JAX reference (unfolded BN, f32, unpadded) for correctness checking
# ---------------------------------------------------------------------------
def reference_forward(x1, x2, params):
    bn_eps = 1e-5
    hi = jax.lax.Precision.HIGHEST

    def branch(x):
        h = jnp.dot(x, params["w1"], precision=hi) + params["b1"]
        h = ((h - params["bn1_mean"]) / jnp.sqrt(params["bn1_var"] + bn_eps)
             * params["bn1_gamma"] + params["bn1_beta"])
        h = jnp.maximum(h, 0.0)
        h = jnp.dot(h, params["w2"], precision=hi) + params["b2"]
        h = ((h - params["bn2_mean"]) / jnp.sqrt(params["bn2_var"] + bn_eps)
             * params["bn2_gamma"] + params["bn2_beta"])
        h = jnp.maximum(h, 0.0)
        h = jnp.dot(h, params["w3"], precision=hi) + params["b3"]
        n = jnp.sqrt(jnp.sum(h * h, axis=-1, keepdims=True))
        return h / jnp.maximum(n, 1e-12)

    z1, z2 = branch(x1), branch(x2)
    n1 = jnp.sqrt(jnp.sum(z1 * z1, axis=-1, keepdims=True))
    n2 = jnp.sqrt(jnp.sum(z2 * z2, axis=-1, keepdims=True))
    cos = jnp.sum(z1 * z2, axis=-1, keepdims=True) / (
        jnp.maximum(n1, 1e-8) * jnp.maximum(n2, 1e-8))
    sim = (cos + 1.0) / 2.0
    return jnp.clip(sim, 1e-7, 1.0 - 1e-7)


if __name__ == "__main__":
    batch = 8
    input_dim = 16
    hidden_dim = 32
    head_output_dim = 32

    key = jax.random.PRNGKey(0)
    kp, kx1, kx2 = jax.random.split(key, 3)

    params = init_params(kp, input_dim, hidden_dim, head_output_dim)
    prepped = prepare_params(params, input_dim, hidden_dim, head_output_dim)

    x1 = jax.random.normal(kx1, (batch, input_dim), jnp.float32)
    x2 = jax.random.normal(kx2, (batch, input_dim), jnp.float32)

    fwd = jax.jit(lambda a, b: siamese_forward(a, b, prepped))
    out = fwd(x1, x2)
    jax.block_until_ready(out)

    assert out.shape == (batch, 1)
    assert bool(jnp.all((out > 0.0) & (out < 1.0)))

    ref = reference_forward(x1, x2, params)
    max_err = float(jnp.max(jnp.abs(out - ref)))
    # bf16 weights/activations (f32 accumulation) vs the all-f32 reference.
    assert bool(jnp.allclose(out, ref, atol=1e-2, rtol=1e-2)), max_err

    print("KERNEL_OK")
</pallas_src>

<mosaic_0001>
module attributes {stable_mosaic.version = 11 : i64} {
  func.func @siamese_kernel(%arg0: i32, %arg1: memref<2x8x16xbf16, #tpu.memory_space<vmem>>, %arg2: memref<16x128xbf16, #tpu.memory_space<vmem>>, %arg3: memref<1x128xf32, #tpu.memory_space<vmem>>, %arg4: memref<128x128xbf16, #tpu.memory_space<vmem>>, %arg5: memref<1x128xf32, #tpu.memory_space<vmem>>, %arg6: memref<128x128xbf16, #tpu.memory_space<vmem>>, %arg7: memref<1x128xf32, #tpu.memory_space<vmem>>, %arg8: memref<8x1xf32, #tpu.memory_space<vmem>>) attributes {dimension_semantics = [#tpu.dimension_semantics<parallel>], iteration_bounds = array<i64: 1>, scalar_prefetch = 0 : i64, scratch_operands = 0 : i64, tpu.core_type = #tpu.core_type<tc>, window_params = [{transform_indices = @transform_0, window_bounds = array<i64: 2, 8, 16>}, {pipeline_mode = #tpu.pipeline_mode<synchronous>, transform_indices = @transform_1, window_bounds = array<i64: 16, 128>}, {pipeline_mode = #tpu.pipeline_mode<synchronous>, transform_indices = @transform_2, window_bounds = array<i64: 1, 128>}, {pipeline_mode = #tpu.pipeline_mode<synchronous>, transform_indices = @transform_3, window_bounds = array<i64: 128, 128>}, {pipeline_mode = #tpu.pipeline_mode<synchronous>, transform_indices = @transform_4, window_bounds = array<i64: 1, 128>}, {pipeline_mode = #tpu.pipeline_mode<synchronous>, transform_indices = @transform_5, window_bounds = array<i64: 128, 128>}, {pipeline_mode = #tpu.pipeline_mode<synchronous>, transform_indices = @transform_6, window_bounds = array<i64: 1, 128>}, {transform_indices = @transform_7, window_bounds = array<i64: 8, 1>}]} {
    %c0 = arith.constant 0 : index
    %c0_0 = arith.constant 0 : index
    %c0_1 = arith.constant 0 : index
    %0 = vector.load %arg1[%c0, %c0_0, %c0_1] : memref<2x8x16xbf16, #tpu.memory_space<vmem>>, vector<2x8x16xbf16>
    %1 = vector.shape_cast %0 : vector<2x8x16xbf16> to vector<16x16xbf16>
    %c0_2 = arith.constant 0 : index
    %c0_3 = arith.constant 0 : index
    %2 = vector.load %arg2[%c0_2, %c0_3] : memref<16x128xbf16, #tpu.memory_space<vmem>>, vector<16x128xbf16>
    %cst = arith.constant dense<0.000000e+00> : vector<16x128xf32>
    %3 = tpu.matmul %1, %2, %cst {dimension_numbers = #tpu.dot_dimension_numbers<[1], [0], [0], [1], [0, 0, 1, 1], [], []>} : vector<16x16xbf16>, vector<16x128xbf16>, vector<16x128xf32> -> vector<16x128xf32>
    %c0_4 = arith.constant 0 : index
    %c0_5 = arith.constant 0 : index
    %4 = vector.load %arg3[%c0_4, %c0_5] : memref<1x128xf32, #tpu.memory_space<vmem>>, vector<1x128xf32>
    %5 = vector.broadcast %4 : vector<1x128xf32> to vector<16x128xf32>
    %6 = arith.addf %3, %5 : vector<16x128xf32>
    %cst_6 = arith.constant 0.000000e+00 : f32
    %7 = vector.broadcast %cst_6 : f32 to vector<16x128xf32>
    %8 = arith.maximumf %6, %7 : vector<16x128xf32>
    %9 = arith.truncf %8 : vector<16x128xf32> to vector<16x128xbf16>
    %c0_7 = arith.constant 0 : index
    %c0_8 = arith.constant 0 : index
    %10 = vector.load %arg4[%c0_7, %c0_8] : memref<128x128xbf16, #tpu.memory_space<vmem>>, vector<128x128xbf16>
    %cst_9 = arith.constant dense<0.000000e+00> : vector<16x128xf32>
    %11 = tpu.matmul %9, %10, %cst_9 {dimension_numbers = #tpu.dot_dimension_numbers<[1], [0], [0], [1], [0, 0, 1, 1], [], []>} : vector<16x128xbf16>, vector<128x128xbf16>, vector<16x128xf32> -> vector<16x128xf32>
    %c0_10 = arith.constant 0 : index
    %c0_11 = arith.constant 0 : index
    %12 = vector.load %arg5[%c0_10, %c0_11] : memref<1x128xf32, #tpu.memory_space<vmem>>, vector<1x128xf32>
    %13 = vector.broadcast %12 : vector<1x128xf32> to vector<16x128xf32>
    %14 = arith.addf %11, %13 : vector<16x128xf32>
    %cst_12 = arith.constant 0.000000e+00 : f32
    %15 = vector.broadcast %cst_12 : f32 to vector<16x128xf32>
    %16 = arith.maximumf %14, %15 : vector<16x128xf32>
    %17 = arith.truncf %16 : vector<16x128xf32> to vector<16x128xbf16>
    %c0_13 = arith.constant 0 : index
    %c0_14 = arith.constant 0 : index
    %18 = vector.load %arg6[%c0_13, %c0_14] : memref<128x128xbf16, #tpu.memory_space<vmem>>, vector<128x128xbf16>
    %cst_15 = arith.constant dense<0.000000e+00> : vector<16x128xf32>
    %19 = tpu.matmul %17, %18, %cst_15 {dimension_numbers = #tpu.dot_dimension_numbers<[1], [0], [0], [1], [0, 0, 1, 1], [], []>} : vector<16x128xbf16>, vector<128x128xbf16>, vector<16x128xf32> -> vector<16x128xf32>
    %c0_16 = arith.constant 0 : index
    %c0_17 = arith.constant 0 : index
    %20 = vector.load %arg7[%c0_16, %c0_17] : memref<1x128xf32, #tpu.memory_space<vmem>>, vector<1x128xf32>
    %21 = vector.broadcast %20 : vector<1x128xf32> to vector<16x128xf32>
    %22 = arith.addf %19, %21 : vector<16x128xf32>
    %23 = arith.mulf %22, %22 : vector<16x128xf32>
    %cst_18 = arith.constant dense<0.000000e+00> : vector<16xf32>
    %24 = vector.multi_reduction <add>, %23, %cst_18 [1] : vector<16x128xf32> to vector<16xf32>
    %25 = vector.shape_cast %24 : vector<16xf32> to vector<16x1xf32>
    %26 = vector.extract_strided_slice %22 {offsets = [0, 0], sizes = [8, 128], strides = [1, 1]} : vector<16x128xf32> to vector<8x128xf32>
    %27 = vector.extract_strided_slice %22 {offsets = [8, 0], sizes = [8, 128], strides = [1, 1]} : vector<16x128xf32> to vector<8x128xf32>
    %28 = vector.extract_strided_slice %25 {offsets = [0, 0], sizes = [8, 1], strides = [1, 1]} : vector<16x1xf32> to vector<8x1xf32>
    %29 = vector.extract_strided_slice %25 {offsets = [8, 0], sizes = [8, 1], strides = [1, 1]} : vector<16x1xf32> to vector<8x1xf32>
    %30 = arith.mulf %26, %27 : vector<8x128xf32>
    %cst_19 = arith.constant dense<0.000000e+00> : vector<8xf32>
    %31 = vector.multi_reduction <add>, %30, %cst_19 [1] : vector<8x128xf32> to vector<8xf32>
    %32 = vector.shape_cast %31 : vector<8xf32> to vector<8x1xf32>
    %cst_20 = arith.constant 1.000000e-24 : f32
    %33 = vector.broadcast %cst_20 : f32 to vector<8x1xf32>
    %34 = arith.maximumf %28, %33 : vector<8x1xf32>
    %35 = math.rsqrt %34 : vector<8x1xf32>
    %36 = arith.mulf %32, %35 : vector<8x1xf32>
    %cst_21 = arith.constant 1.000000e-24 : f32
    %37 = vector.broadcast %cst_21 : f32 to vector<8x1xf32>
    %38 = arith.maximumf %29, %37 : vector<8x1xf32>
    %39 = math.rsqrt %38 : vector<8x1xf32>
    %40 = arith.mulf %36, %39 : vector<8x1xf32>
    %cst_22 = arith.constant 1.000000e+00 : f32
    %41 = vector.broadcast %cst_22 : f32 to vector<8x1xf32>
    %42 = arith.addf %40, %41 : vector<8x1xf32>
    %cst_23 = arith.constant 5.000000e-01 : f32
    %43 = vector.broadcast %cst_23 : f32 to vector<8x1xf32>
    %44 = arith.mulf %42, %43 : vector<8x1xf32>
    %cst_24 = arith.constant 1.000000e-07 : f32
    %cst_25 = arith.constant 0.99999988 : f32
    %45 = vector.broadcast %cst_24 : f32 to vector<8x1xf32>
    %46 = arith.maximumf %45, %44 : vector<8x1xf32>
    %47 = vector.broadcast %cst_25 : f32 to vector<8x1xf32>
    %48 = arith.minimumf %47, %46 : vector<8x1xf32>
    %c0_26 = arith.constant 0 : index
    %c0_27 = arith.constant 0 : index
    %49 = vector.load %arg8[%c0_26, %c0_27] : memref<8x1xf32, #tpu.memory_space<vmem>>, vector<8x1xf32>
    tpu.vector_store %arg8[%c0_26, %c0_27], %48 {strides = array<i32>} : memref<8x1xf32, #tpu.memory_space<vmem>>, vector<8x1xf32>,
    return
  }
  func.func @transform_0(%arg0: i32) -> (i32, i32, i32) {
    %c0_i32 = arith.constant 0 : i32
    %c0_i32_0 = arith.constant 0 : i32
    %c0_i32_1 = arith.constant 0 : i32
    return %c0_i32, %arg0, %c0_i32_0 : i32, i32, i32
  }
  func.func @transform_1(%arg0: i32) -> (i32, i32) {
    %c0_i32 = arith.constant 0 : i32
    %c0_i32_0 = arith.constant 0 : i32
    %c0_i32_1 = arith.constant 0 : i32
    return %c0_i32, %c0_i32_0 : i32, i32
  }
  func.func @transform_2(%arg0: i32) -> (i32, i32) {
    %c0_i32 = arith.constant 0 : i32
    %c0_i32_0 = arith.constant 0 : i32
    %c0_i32_1 = arith.constant 0 : i32
    return %c0_i32, %c0_i32_0 : i32, i32
  }
  func.func @transform_3(%arg0: i32) -> (i32, i32) {
    %c0_i32 = arith.constant 0 : i32
    %c0_i32_0 = arith.constant 0 : i32
    %c0_i32_1 = arith.constant 0 : i32
    return %c0_i32, %c0_i32_0 : i32, i32
  }
  func.func @transform_4(%arg0: i32) -> (i32, i32) {
    %c0_i32 = arith.constant 0 : i32
    %c0_i32_0 = arith.constant 0 : i32
    %c0_i32_1 = arith.constant 0 : i32
    return %c0_i32, %c0_i32_0 : i32, i32
  }
  func.func @transform_5(%arg0: i32) -> (i32, i32) {
    %c0_i32 = arith.constant 0 : i32
    %c0_i32_0 = arith.constant 0 : i32
    %c0_i32_1 = arith.constant 0 : i32
    return %c0_i32, %c0_i32_0 : i32, i32
  }
  func.func @transform_6(%arg0: i32) -> (i32, i32) {
    %c0_i32 = arith.constant 0 : i32
    %c0_i32_0 = arith.constant 0 : i32
    %c0_i32_1 = arith.constant 0 : i32
    return %c0_i32, %c0_i32_0 : i32, i32
  }
  func.func @transform_7(%arg0: i32) -> (i32, i32) {
    %c0_i32 = arith.constant 0 : i32
    %c0_i32_0 = arith.constant 0 : i32
    return %arg0, %c0_i32 : i32, i32
  }
}

</mosaic_0001>

<llo_original>
// kernel: _lambda_.1
$region0: #{_lambda_.1}
  #allocation0 [shape = 'u32[]', space=smem, size = 0x4, offset = 0x4, fixed_abs, tag = 'smem constant byte address 0x4 - core index']
  #allocation1 [shape = 'u32[144,128]{1,0:T(1,128)}', space=vmem, size = 0x12000, scoped, tag = 'internal scratch']
  %s0 = inlined_call_operand.vmem [shape: bf16[2,8,16], index: 0, kind: input, shape index: {}]
  %s1 = inlined_call_operand.vmem [shape: bf16[16,128], index: 1, kind: input, shape index: {}]
  %s2 = inlined_call_operand.vmem [shape: f32[1,128], index: 2, kind: input, shape index: {}, may-alias: {2,4,6}]
  %s3 = inlined_call_operand.hbm [shape: bf16[128,128], index: 3, kind: input, shape index: {}]
  %s4 = inlined_call_operand.vmem [shape: f32[1,128], index: 4, kind: input, shape index: {}, may-alias: {2,4,6}]
  %s5 = inlined_call_operand.hbm [shape: bf16[128,128], index: 5, kind: input, shape index: {}]
  %s6 = inlined_call_operand.vmem [shape: f32[1,128], index: 6, kind: input, shape index: {}, may-alias: {2,4,6}]
  %s7 = inlined_call_operand.vmem [shape: f32[8,1], index: 7, kind: output, shape index: {}]
  %s8 = sld [smem:[#allocation0]]
  $region46: #{_lambda_.1} parent=0
    _
  %s10 = ssub.s32 1, %s8
  %s11 = scalar_select 0, %s10, %s8
  $region1: #{_lambda_.1} parent=0
    #allocation2 [shape = 'u8[32768]{0}', space=vmem, size = 0x8000, scoped, tag = 'input window, operand 3, single buffered']
    #allocation3 [shape = 's32[1]{0}', space=sflag, size = 0x4, scoped, tag = 'scoped memory for _lambda_.1']
    #allocation4 [shape = 'u8[32768]{0}', space=vmem, size = 0x8000, scoped, tag = 'input window, operand 5, single buffered']
    #allocation5 [shape = 's32[1]{0}', space=sflag, size = 0x4, scoped, tag = 'scoped memory for _lambda_.1']
    %12 = vsyncpa [#allocation3], 0
    %13 = vsyncpa [#allocation5], 0
    // Predicated region
    $region2: #{_lambda_.1} parent=1 // pred_check
      _
    $region3: #{_lambda_.1} parent=1 // pred_check_branch
      %15 = sbr.rel (0) target = $region5
    $region4: #{_lambda_.1} parent=1 // pred_region
      _
    $region5: #{_lambda_.1} parent=1 // pred_fallthru
      _
    // Predicated region
    $region6: #{_lambda_.1} parent=1 // pred_check
      _
    $region7: #{_lambda_.1} parent=1 // pred_check_branch
      %17 = sbr.rel (0) target = $region9
    $region8: #{_lambda_.1} parent=1 // pred_region
      _
    $region9: #{_lambda_.1} parent=1 // pred_fallthru
      _
    // Predicated region
    $region10: #{_lambda_.1} parent=1 // pred_check
      _
    $region11: #{_lambda_.1} parent=1 // pred_check_branch
      %19 = sbr.rel (0) target = $region13
    $region12: #{_lambda_.1} parent=1 // pred_region
      _
    $region13: #{_lambda_.1} parent=1 // pred_fallthru
      _
    // Predicated region
    $region14: #{_lambda_.1} parent=1 // pred_check
      _
    $region15: #{_lambda_.1} parent=1 // pred_check_branch
      %21 = sbr.rel (0) target = $region17
    $region16: #{_lambda_.1} parent=1 // pred_region
      %s23 = ssub.s32 1024, 1024
      %24 = vsyncadd [#allocation3], %s23
      %s25 = sshll.u32 [#allocation2], 4
      %s26 = int_to_ptr.vmem [resolvable:$true] %s25
      %31 = dma.hbm_to_vmem [thread:$0]  %s3, 1024, %s26, [#allocation3], 64, 64, 4
    $region17: #{_lambda_.1} parent=1 // pred_fallthru
      _
    // Predicated region
    $region18: #{_lambda_.1} parent=1 // pred_check
      _
    $region19: #{_lambda_.1} parent=1 // pred_check_branch
      %33 = sbr.rel (0) target = $region21
    $region20: #{_lambda_.1} parent=1 // pred_region
      _
    $region21: #{_lambda_.1} parent=1 // pred_fallthru
      _
    // Predicated region
    $region22: #{_lambda_.1} parent=1 // pred_check
      _
    $region23: #{_lambda_.1} parent=1 // pred_check_branch
      %35 = sbr.rel (0) target = $region25
    $region24: #{_lambda_.1} parent=1 // pred_region
      %s37 = ssub.s32 1024, 1024
      %38 = vsyncadd [#allocation5], %s37
      %s39 = sshll.u32 [#allocation4], 4
      %s40 = int_to_ptr.vmem [resolvable:$true] %s39
      %45 = dma.hbm_to_vmem [thread:$0]  %s5, 1024, %s40, [#allocation5], 64, 64, 4
    $region25: #{_lambda_.1} parent=1 // pred_fallthru
      _
    // Predicated region
    $region26: #{_lambda_.1} parent=1 // pred_check
      _
    $region27: #{_lambda_.1} parent=1 // pred_check_branch
      %47 = sbr.rel (0) target = $region29
    $region28: #{_lambda_.1} parent=1 // pred_region
      _
    $region29: #{_lambda_.1} parent=1 // pred_fallthru
      _
    // Predicated region
    $region30: #{_lambda_.1} parent=1 // pred_check
      _
    $region31: #{_lambda_.1} parent=1 // pred_check_branch
      %49 = sbr.rel (0) target = $region33
    $region32: #{_lambda_.1} parent=1 // pred_region
      %50 = dma.done [#allocation3], 1024
    $region33: #{_lambda_.1} parent=1 // pred_fallthru
      _
    // Predicated region
    $region34: #{_lambda_.1} parent=1 // pred_check
      _
    $region35: #{_lambda_.1} parent=1 // pred_check_branch
      %52 = sbr.rel (0) target = $region37
    $region36: #{_lambda_.1} parent=1 // pred_region
      %53 = dma.done [#allocation5], 1024
    $region37: #{_lambda_.1} parent=1 // pred_fallthru
      _
    %v55 = vld [vmem:[%s0] sm:$0xf]
    %v56 = vld [vmem:[%s0 + $0x4] sm:$0xf]
    %v57 = vld [vmem:[%s1] sm:$0xf]
    %v58 = vld [vmem:[%s1 + $0x4] sm:$0xf]
    %v59 = vld [vmem:[%s2] sm:$0x1]
    %v61 = vlaneseq
    %v62 = vshrl.u32 %v61, 7
    %v63 = vsub.s32 0, %v62
    %v64 = vrot.slane %v59, %v63
    %v68 = vunpack.c.l.b16 %v55
    %v69 = vunpack.c.l.b16 %v56
    %v70 = vpack.c.b16 %v69, %v68
    %v73 = vunpack.c.l.b16 %v57
    %v74 = vunpack.c.l.b16 %v58
    %v75 = vpack.c.b16 %v74, %v73
    %vm77 = vcmask 130048
    %v79 = vsel %vm77, %v70, 0
    %81 = vmatprep.subr.bf16.mxu0 0
    %82 = vmatpush1.bf16.msra.mxu0 0
    %83 = vmatprep.subr.bf16.mxu0 0
    %84 = vmatpush1.bf16.msra.mxu0 0
    %85 = vmatprep.subr.bf16.mxu0 0
    %86 = vmatpush1.bf16.msra.mxu0 0
    %87 = vmatprep.subr.bf16.mxu0 0
    %88 = vmatpush1.bf16.msra.mxu0 0
    %89 = vmatprep.subr.bf16.mxu0 0
    %90 = vmatpush1.bf16.msra.mxu0 0
    %91 = vmatprep.subr.bf16.mxu0 0
    %92 = vmatpush1.bf16.msra.mxu0 0
    %93 = vmatprep.subr.bf16.mxu0 0
    %94 = vmatpush1.bf16.msra.mxu0 0
    %95 = vmatprep.subr.bf16.mxu0 0
    %96 = vmatpush1.bf16.msra.mxu0 %v75
    %97 = vmatprep.subr.bf16.mxu0 0
    %98 = vmatpush2.bf16.msra.mxu0 0
    %99 = vmatprep.subr.bf16.mxu0 0
    %100 = vmatpush2.bf16.msra.mxu0 0
    %101 = vmatprep.subr.bf16.mxu0 0
    %102 = vmatpush2.bf16.msra.mxu0 0
    %103 = vmatprep.subr.bf16.mxu0 0
    %104 = vmatpush2.bf16.msra.mxu0 0
    %105 = vmatprep.subr.bf16.mxu0 0
    %106 = vmatpush2.bf16.msra.mxu0 0
    %107 = vmatprep.subr.bf16.mxu0 0
    %108 = vmatpush2.bf16.msra.mxu0 0
    %109 = vmatprep.subr.bf16.mxu0 0
    %110 = vmatpush2.bf16.msra.mxu0 0
    %111 = vmatprep.subr.bf16.mxu0 0
    %112 = vmatpush2.bf16.msra.mxu0 0
    %113 = vmatprep.mubr.bf16.mxu0 0
    %114 = vmatmul.mubr.bf16.gmra.mxu0 %v79
    %v115 = vpop.f32.mrf.mxu0
    %v116 = vadd.f32 %v64, %v115
    %v117 = vpop.f32.mrf.mxu0
    %v118 = vpop.f32.mrf.mxu0
    %v119 = vadd.f32 %v64, %v118
    %v120 = vpop.f32.mrf.mxu0
    %121 = vdwg.mxu0
    %v122 = vmax.f32 %v116, 0.0
    %v123 = vmax.f32 %v119, 0.0
    %v124 = vpack.c.bf16 %v123, %v122
    %v125 = vld [vmem:[#allocation2] sm:$0xf]
    %v126 = vld [vmem:[#allocation2 + $0x4] sm:$0xf]
    %v127 = vld [vmem:[#allocation2 + $0x8] sm:$0xf]
    %v128 = vld [vmem:[#allocation2 + $0xc] sm:$0xf]
    %v129 = vld [vmem:[#allocation2 + $0x10] sm:$0xf]
    %v130 = vld [vmem:[#allocation2 + $0x14] sm:$0xf]
    %v131 = vld [vmem:[#allocation2 + $0x18] sm:$0xf]
    %v132 = vld [vmem:[#allocation2 + $0x1c] sm:$0xf]
    %v133 = vld [vmem:[#allocation2 + $0x20] sm:$0xf]
    %v134 = vld [vmem:[#allocation2 + $0x24] sm:$0xf]
    %v135 = vld [vmem:[#allocation2 + $0x28] sm:$0xf]
    %v136 = vld [vmem:[#allocation2 + $0x2c] sm:$0xf]
    %v137 = vld [vmem:[#allocation2 + $0x30] sm:$0xf]
    %v138 = vld [vmem:[#allocation2 + $0x34] sm:$0xf]
    %v139 = vld [vmem:[#allocation2 + $0x38] sm:$0xf]
    %v140 = vld [vmem:[#allocation2 + $0x3c] sm:$0xf]
    %v141 = vld [vmem:[%s4] sm:$0x1]
    %v143 = vlaneseq
    %v144 = vshrl.u32 %v143, 7
    %v145 = vsub.s32 0, %v144
    %v146 = vrot.slane %v141, %v145
    %v164 = vunpack.c.l.b16 %v125
    %v165 = vunpack.c.l.b16 %v126
    %v166 = vunpack.c.l.b16 %v127
    %v167 = vunpack.c.l.b16 %v128
    %v168 = vunpack.c.l.b16 %v129
    %v169 = vunpack.c.l.b16 %v130
    %v170 = vunpack.c.l.b16 %v131
    %v171 = vunpack.c.l.b16 %v132
    %v172 = vunpack.c.l.b16 %v133
    %v173 = vunpack.c.l.b16 %v134
    %v174 = vunpack.c.l.b16 %v135
    %v175 = vunpack.c.l.b16 %v136
    %v176 = vunpack.c.l.b16 %v137
    %v177 = vunpack.c.l.b16 %v138
    %v178 = vunpack.c.l.b16 %v139
    %v179 = vunpack.c.l.b16 %v140
    %v180 = vpack.c.b16 %v165, %v164
    %v181 = vpack.c.b16 %v167, %v166
    %v182 = vpack.c.b16 %v169, %v168
    %v183 = vpack.c.b16 %v171, %v170
    %v184 = vpack.c.b16 %v173, %v172
    %v185 = vpack.c.b16 %v175, %v174
    %v186 = vpack.c.b16 %v177, %v176
    %v187 = vpack.c.b16 %v179, %v178
    %196 = vmatprep.subr.bf16.mxu0 0
    %197 = vmatpush1.bf16.msra.mxu0 %v187
    %198 = vmatprep.subr.bf16.mxu0 0
    %199 = vmatpush1.bf16.msra.mxu0 %v186
    %200 = vmatprep.subr.bf16.mxu0 0
    %201 = vmatpush1.bf16.msra.mxu0 %v185
    %202 = vmatprep.subr.bf16.mxu0 0
    %203 = vmatpush1.bf16.msra.mxu0 %v184
    %204 = vmatprep.subr.bf16.mxu0 0
    %205 = vmatpush1.bf16.msra.mxu0 %v183
    %206 = vmatprep.subr.bf16.mxu0 0
    %207 = vmatpush1.bf16.msra.mxu0 %v182
    %208 = vmatprep.subr.bf16.mxu0 0
    %209 = vmatpush1.bf16.msra.mxu0 %v181
    %210 = vmatprep.subr.bf16.mxu0 0
    %211 = vmatpush1.bf16.msra.mxu0 %v180
    %212 = vmatprep.subr.bf16.mxu0 0
    %213 = vmatpush2.bf16.msra.mxu0 0
    %214 = vmatprep.subr.bf16.mxu0 0
    %215 = vmatpush2.bf16.msra.mxu0 0
    %216 = vmatprep.subr.bf16.mxu0 0
    %217 = vmatpush2.bf16.msra.mxu0 0
    %218 = vmatprep.subr.bf16.mxu0 0
    %219 = vmatpush2.bf16.msra.mxu0 0
    %220 = vmatprep.subr.bf16.mxu0 0
    %221 = vmatpush2.bf16.msra.mxu0 0
    %222 = vmatprep.subr.bf16.mxu0 0
    %223 = vmatpush2.bf16.msra.mxu0 0
    %224 = vmatprep.subr.bf16.mxu0 0
    %225 = vmatpush2.bf16.msra.mxu0 0
    %226 = vmatprep.subr.bf16.mxu0 0
    %227 = vmatpush2.bf16.msra.mxu0 0
    %228 = vmatprep.mubr.bf16.mxu0 0
    %229 = vmatmul.mubr.bf16.gmra.mxu0 %v124
    %v230 = vpop.f32.mrf.mxu0
    %v231 = vadd.f32 %v146, %v230
    %v232 = vpop.f32.mrf.mxu0
    %v233 = vpop.f32.mrf.mxu0
    %v234 = vadd.f32 %v146, %v233
    %v235 = vpop.f32.mrf.mxu0
    %236 = vdwg.mxu0
    %v237 = vmax.f32 %v231, 0.0
    %v238 = vmax.f32 %v234, 0.0
    %v239 = vpack.c.bf16 %v238, %v237
    %v240 = vld [vmem:[#allocation4] sm:$0xf]
    %v241 = vld [vmem:[#allocation4 + $0x4] sm:$0xf]
    %v242 = vld [vmem:[#allocation4 + $0x8] sm:$0xf]
    %v243 = vld [vmem:[#allocation4 + $0xc] sm:$0xf]
    %v244 = vld [vmem:[#allocation4 + $0x10] sm:$0xf]
    %v245 = vld [vmem:[#allocation4 + $0x14] sm:$0xf]
    %v246 = vld [vmem:[#allocation4 + $0x18] sm:$0xf]
    %v247 = vld [vmem:[#allocation4 + $0x1c] sm:$0xf]
    %v248 = vld [vmem:[#allocation4 + $0x20] sm:$0xf]
    %v249 = vld [vmem:[#allocation4 + $0x24] sm:$0xf]
    %v250 = vld [vmem:[#allocation4 + $0x28] sm:$0xf]
    %v251 = vld [vmem:[#allocation4 + $0x2c] sm:$0xf]
    %v252 = vld [vmem:[#allocation4 + $0x30] sm:$0xf]
    %v253 = vld [vmem:[#allocation4 + $0x34] sm:$0xf]
    %v254 = vld [vmem:[#allocation4 + $0x38] sm:$0xf]
    %v255 = vld [vmem:[#allocation4 + $0x3c] sm:$0xf]
    %v256 = vld [vmem:[%s6] sm:$0x1]
    %v258 = vlaneseq
    %v259 = vshrl.u32 %v258, 7
    %v260 = vsub.s32 0, %v259
    %v261 = vrot.slane %v256, %v260
    %v279 = vunpack.c.l.b16 %v240
    %v280 = vunpack.c.l.b16 %v241
    %v281 = vunpack.c.l.b16 %v242
    %v282 = vunpack.c.l.b16 %v243
    %v283 = vunpack.c.l.b16 %v244
    %v284 = vunpack.c.l.b16 %v245
    %v285 = vunpack.c.l.b16 %v246
    %v286 = vunpack.c.l.b16 %v247
    %v287 = vunpack.c.l.b16 %v248
    %v288 = vunpack.c.l.b16 %v249
    %v289 = vunpack.c.l.b16 %v250
    %v290 = vunpack.c.l.b16 %v251
    %v291 = vunpack.c.l.b16 %v252
    %v292 = vunpack.c.l.b16 %v253
    %v293 = vunpack.c.l.b16 %v254
    %v294 = vunpack.c.l.b16 %v255
    %v295 = vpack.c.b16 %v280, %v279
    %v296 = vpack.c.b16 %v282, %v281
    %v297 = vpack.c.b16 %v284, %v283
    %v298 = vpack.c.b16 %v286, %v285
    %v299 = vpack.c.b16 %v288, %v287
    %v300 = vpack.c.b16 %v290, %v289
    %v301 = vpack.c.b16 %v292, %v291
    %v302 = vpack.c.b16 %v294, %v293
    %311 = vmatprep.subr.bf16.mxu0 0
    %312 = vmatpush1.bf16.msra.mxu0 %v302
    %313 = vmatprep.subr.bf16.mxu0 0
    %314 = vmatpush1.bf16.msra.mxu0 %v301
    %315 = vmatprep.subr.bf16.mxu0 0
    %316 = vmatpush1.bf16.msra.mxu0 %v300
    %317 = vmatprep.subr.bf16.mxu0 0
    %318 = vmatpush1.bf16.msra.mxu0 %v299
    %319 = vmatprep.subr.bf16.mxu0 0
    %320 = vmatpush1.bf16.msra.mxu0 %v298
    %321 = vmatprep.subr.bf16.mxu0 0
    %322 = vmatpush1.bf16.msra.mxu0 %v297
    %323 = vmatprep.subr.bf16.mxu0 0
    %324 = vmatpush1.bf16.msra.mxu0 %v296
    %325 = vmatprep.subr.bf16.mxu0 0
    %326 = vmatpush1.bf16.msra.mxu0 %v295
    %327 = vmatprep.subr.bf16.mxu0 0
    %328 = vmatpush2.bf16.msra.mxu0 0
    %329 = vmatprep.subr.bf16.mxu0 0
    %330 = vmatpush2.bf16.msra.mxu0 0
    %331 = vmatprep.subr.bf16.mxu0 0
    %332 = vmatpush2.bf16.msra.mxu0 0
    %333 = vmatprep.subr.bf16.mxu0 0
    %334 = vmatpush2.bf16.msra.mxu0 0
    %335 = vmatprep.subr.bf16.mxu0 0
    %336 = vmatpush2.bf16.msra.mxu0 0
    %337 = vmatprep.subr.bf16.mxu0 0
    %338 = vmatpush2.bf16.msra.mxu0 0
    %339 = vmatprep.subr.bf16.mxu0 0
    %340 = vmatpush2.bf16.msra.mxu0 0
    %341 = vmatprep.subr.bf16.mxu0 0
    %342 = vmatpush2.bf16.msra.mxu0 0
    %343 = vmatprep.mubr.bf16.mxu0 0
    %344 = vmatmul.mubr.bf16.gmra.mxu0 %v239
    %v345 = vpop.f32.mrf.mxu0
    %v346 = vadd.f32 %v261, %v345
    %v347 = vpop.f32.mrf.mxu0
    %v348 = vpop.f32.mrf.mxu0
    %v349 = vadd.f32 %v261, %v348
    %v350 = vpop.f32.mrf.mxu0
    %351 = vdwg.mxu0
    %v352 = vmul.f32 %v346, %v346
    %v353 = vmul.f32 %v349, %v349
    %354 = vadd.xlane.f32.xlu0 %v352
    %v355 = vpop.xlane.xlu0 %354
    %356 = vadd.xlane.f32.xlu0 %v353
    %v357 = vpop.xlane.xlu0 %356
    %v358 = vmul.f32 %v346, %v349
    %359 = vadd.xlane.f32.xlu0 %v358
    %v360 = vpop.xlane.xlu0 %359
    %v361 = vmax.f32 %v355, 1e-24
    %v362 = vrsqrt.pop %v361
    %v363 = vmul.f32 %v360, %v362
    %v364 = vmax.f32 %v357, 1e-24
    %v365 = vrsqrt.pop %v364
    %v366 = vmul.f32 %v363, %v365
    %v367 = vadd.f32 %v366, 1.0
    %v368 = vmul.f32 %v367, 0.5
    %v369 = vmax.f32 %v368, 1e-07
    %v370 = vmin.f32 %v369, 0.9999999
    %vm371 = vcmask 7168
    %372 = vst.msk [vmem:[%s7] sm:$0xff] %vm371, %v370
    // Predicated region
    $region38: #{_lambda_.1} parent=1 // pred_check
      _
    $region39: #{_lambda_.1} parent=1 // pred_check_branch
      %374 = sbr.rel (0) target = $region41
    $region40: #{_lambda_.1} parent=1 // pred_region
      _
    $region41: #{_lambda_.1} parent=1 // pred_fallthru
      _
    // Predicated region
    $region42: #{_lambda_.1} parent=1 // pred_check
      _
    $region43: #{_lambda_.1} parent=1 // pred_check_branch
      %376 = sbr.rel (0) target = $region45
    $region44: #{_lambda_.1} parent=1 // pred_region
      _
    $region45: #{_lambda_.1} parent=1 // pred_fallthru
      _
    %377 = vsyncpa [#allocation3], 1
    %378 = vsyncpa [#allocation5], 1

</llo_original>
